<compile_context>
chip_gen: v5e
topology: v5e:2x2
jax: 0.10.0
libtpu: 0.0.40
codegen_flags: <defaults>
</compile_context>

<pallas_src>
import math

import jax
import jax.numpy as jnp
from jax.experimental import pallas as pl
from jax.experimental.pallas import tpu as pltpu


def _softplus(x):
    # Numerically stable softplus matching torch.nn.functional.softplus.
    return jnp.maximum(x, 0.0) + jnp.log1p(jnp.exp(-jnp.abs(x)))


def _round_up(x, m):
    return ((x + m - 1) // m) * m


def tm_ig_kernel(wv_ref, wo_ref, xv_ref, xo_ref, out_ref):
    eps = 1e-6
    f32 = jnp.float32

    # (TN, LV) @ (LV, 8) + (TN, F*LB) @ (F*LB, 8) -> (TN, 8), f32 accumulate.
    raw = jnp.dot(xv_ref[...].astype(f32), wv_ref[...],
                  preferred_element_type=f32)
    raw = raw + jnp.dot(xo_ref[...].astype(f32), wo_ref[...],
                        preferred_element_type=f32)

    # One small transpose (8 * TN elements) so the whole epilogue + store is
    # lane-dense with the batch on lanes.
    raw_t = raw.T                               # (8, TN)

    # Only rows 0..5 carry signal (rows 6,7 of the weight slabs are zero).
    sp = _softplus(raw_t[0:6, :])               # (6, TN)

    alpha0 = 1.0 + sp[0:1, :]                   # phi   . vol_history
    beta0 = eps + sp[1:2, :]                    # xi    . vol_history
    g_hist = sp[2:3, :]                         # theta . vol_history
    alpha1 = 1.0 + sp[3:4, :]                   # U   @ OB @ V
    beta1 = eps + sp[4:5, :]                    # U_s @ OB @ V_s
    g_order = sp[5:6, :]                        # A   @ OB @ B

    # Exact reciprocals (EUP) + multiplies instead of three VPU divides.
    gating = g_hist * pl.reciprocal(g_hist + g_order + eps)
    # NOTE: second term divides by (alpha0 - 1) with no eps, exactly as in the
    # reference PyTorch forward() (which uses alpha_0, not alpha_1, there).
    mixture = (gating * beta0 * pl.reciprocal(alpha0 - 1.0 + eps)
               + (1.0 - gating) * beta1 * pl.reciprocal(alpha0 - 1.0))

    # Single unmasked (8, TN) store.
    out_ref[...] = jnp.concatenate(
        [mixture, alpha0, beta0, gating, alpha1, beta1,
         jnp.zeros((2, mixture.shape[1]), f32)],
        axis=0,
    )


def tm_ig_forward(vol_history, order_book_feats, params, *,
                  input_dtype=jnp.float32):
    """Pallas implementation of TM_IG.forward (batched).

    vol_history:       (N, LV) float
    order_book_feats:  (N, F, LB) float
    Returns (mixture_mean, (alpha_0, beta_0), gating, (alpha_1, beta_1)),
    each of shape (N,), float32.

    input_dtype=jnp.bfloat16 halves the dominant HBM read of the x inputs;
    weights and all epilogue math stay in float32.
    """
    N, LV = vol_history.shape
    _, F, LB = order_book_feats.shape
    KO = F * LB
    f32 = jnp.float32

    # ---- Parameter glue (plain JAX, tiny): two feature-major weight slabs ---
    # Columns 0..5 = [phi, xi, theta, U*V, U_s*V_s, A*B]; columns 6,7 = zero.
    zv = jnp.zeros((LV,), f32)
    zo = jnp.zeros((KO,), f32)
    uv = jnp.outer(params["U"], params["V"]).reshape(-1).astype(f32)
    usv = jnp.outer(params["U_s"], params["V_s"]).reshape(-1).astype(f32)
    ab = jnp.outer(params["A"], params["B"]).reshape(-1).astype(f32)
    w_vol = jnp.stack(
        [params["phi"].astype(f32), params["xi"].astype(f32),
         params["theta"].astype(f32), zv, zv, zv, zv, zv], axis=1)   # (LV, 8)
    w_ob = jnp.stack([zo, zo, zo, uv, usv, ab, zo, zo], axis=1)      # (KO, 8)

    # ---- Batch-major inputs, no extra HBM pass -----------------------------
    x_vol = vol_history.astype(input_dtype)                 # (N, LV)
    x_ob = order_book_feats.reshape(N, KO).astype(input_dtype)  # (N, KO)

    # ---- Batch tile sized from a VMEM budget --------------------------------
    # Per batch row in VMEM (lane-padded layout): double-buffered inputs plus
    # up to ~3 lane-padded (TN, 8) f32 matmul temporaries.
    isz = jnp.dtype(input_dtype).itemsize
    per_row = 2 * (_round_up(LV, 128) + _round_up(KO, 128)) * isz + 3 * 128 * 4
    budget_rows = (24 * 1024 * 1024) // per_row              # ~24 MiB of 32 MiB
    tn = min(16384, max(128, (budget_rows // 128) * 128))

    n_lanes = _round_up(N, 128)
    tn = min(tn, n_lanes)
    # Prefer >= 2 grid steps for non-trivial batches so v7x's two TensorCores
    # both get work ("parallel" axis); tiny batches stay single-step.
    if n_lanes > 512 and tn >= n_lanes:
        tn = _round_up((n_lanes + 1) // 2, 128)
    n_tiles = pl.cdiv(N, tn)

    cost = pl.CostEstimate(
        flops=2 * 8 * (LV + KO) * N + 30 * N,
        transcendentals=12 * N,
        bytes_accessed=N * (LV + KO) * isz + 8 * N * 4 + 8 * (LV + KO) * 4,
    )

    out = pl.pallas_call(
        tm_ig_kernel,
        grid=(n_tiles,),
        in_specs=[
            pl.BlockSpec((LV, 8), lambda i: (0, 0)),   # weights stay resident
            pl.BlockSpec((KO, 8), lambda i: (0, 0)),
            pl.BlockSpec((tn, LV), lambda i: (i, 0)),  # pipelined batch tiles
            pl.BlockSpec((tn, KO), lambda i: (i, 0)),
        ],
        out_specs=pl.BlockSpec((8, tn), lambda i: (0, i)),
        out_shape=jax.ShapeDtypeStruct((8, N), jnp.float32),
        compiler_params=pltpu.CompilerParams(
            dimension_semantics=("parallel",),
            vmem_limit_bytes=32 * 1024 * 1024,
        ),
        cost_estimate=cost,
    )(w_vol, w_ob, x_vol, x_ob)

    mixture, alpha0, beta0, gating, alpha1, beta1 = (
        out[0], out[1], out[2], out[3], out[4], out[5])
    return mixture, (alpha0, beta0), gating, (alpha1, beta1)


def tm_ig_forward_ref(vol_history, order_book_feats, params):
    """Pure-JAX reference mirroring the PyTorch forward()."""
    eps = 1e-6
    sp = _softplus
    alpha0 = 1.0 + sp(jnp.sum(params["phi"] * vol_history, axis=1))
    beta0 = eps + sp(jnp.sum(params["xi"] * vol_history, axis=1))
    alpha1 = 1.0 + sp(jnp.einsum("f,nfl,l->n", params["U"], order_book_feats, params["V"]))
    beta1 = eps + sp(jnp.einsum("f,nfl,l->n", params["U_s"], order_book_feats, params["V_s"]))
    g_hist = sp(jnp.sum(params["theta"] * vol_history, axis=1))
    g_order = sp(jnp.einsum("f,nfl,l->n", params["A"], order_book_feats, params["B"]))
    gating = g_hist / (g_hist + g_order + eps)
    mixture = (gating * beta0 / (alpha0 - 1.0 + eps)
               + (1.0 - gating) * beta1 / (alpha0 - 1.0))
    return mixture, (alpha0, beta0), gating, (alpha1, beta1)


def _xavier_vec(key, n):
    # torch.nn.init.xavier_uniform_ on param.unsqueeze(1): shape (n, 1)
    # fan_in = 1, fan_out = n -> bound = sqrt(6 / (n + 1))
    bound = math.sqrt(6.0 / (n + 1))
    return jax.random.uniform(key, (n,), jnp.float32, -bound, bound)


if __name__ == "__main__":
    # Small shapes consistent with the module: lv/lb = lookback horizons,
    # F = n_features, N = batch of samples.
    LV, LB, F = 8, 8, 4

    key = jax.random.PRNGKey(0)
    keys = jax.random.split(key, 11)

    params = {
        "phi": _xavier_vec(keys[0], LV),
        "xi": _xavier_vec(keys[1], LV),
        "U": _xavier_vec(keys[2], F),
        "V": _xavier_vec(keys[3], LB),
        "U_s": _xavier_vec(keys[4], F),
        "V_s": _xavier_vec(keys[5], LB),
        "theta": _xavier_vec(keys[6], LV),
        "A": _xavier_vec(keys[7], F),
        "B": _xavier_vec(keys[8], LB),
    }

    fwd = jax.jit(tm_ig_forward)

    # Batch sizes exercising: tiny single tile, lane-padded edge, multi-tile
    # grid with a partial last tile.
    for N in (8, 200, 1000):
        k_v, k_ob = jax.random.split(jax.random.fold_in(keys[9], N))
        vol_history = jnp.abs(jax.random.normal(k_v, (N, LV), jnp.float32)) * 0.1
        order_book_feats = jax.random.normal(k_ob, (N, F, LB), jnp.float32)

        out = fwd(vol_history, order_book_feats, params)
        jax.block_until_ready(out)

        ref = tm_ig_forward_ref(vol_history, order_book_feats, params)

        flat_out = jax.tree_util.tree_leaves(out)
        flat_ref = jax.tree_util.tree_leaves(ref)
        for a, b in zip(flat_out, flat_ref):
            assert a.shape == b.shape, (a.shape, b.shape)
            assert jnp.allclose(a, b, rtol=1e-5, atol=1e-5), (N, a, b)

    print("KERNEL_OK")
</pallas_src>

<mosaic_0001>
module attributes {stable_mosaic.version = 11 : i64} {
  func.func @tm_ig_kernel(%arg0: i32, %arg1: memref<8x8xf32, #tpu.memory_space<vmem>>, %arg2: memref<32x8xf32, #tpu.memory_space<vmem>>, %arg3: memref<128x8xf32, #tpu.memory_space<vmem>>, %arg4: memref<128x32xf32, #tpu.memory_space<vmem>>, %arg5: memref<8x128xf32, #tpu.memory_space<vmem>>) attributes {dimension_semantics = [#tpu.dimension_semantics<parallel>], iteration_bounds = array<i64: 1>, scalar_prefetch = 0 : i64, scratch_operands = 0 : i64, tpu.core_type = #tpu.core_type<tc>, window_params = [{pipeline_mode = #tpu.pipeline_mode<synchronous>, transform_indices = @transform_0, window_bounds = array<i64: 8, 8>}, {pipeline_mode = #tpu.pipeline_mode<synchronous>, transform_indices = @transform_1, window_bounds = array<i64: 32, 8>}, {transform_indices = @transform_2, window_bounds = array<i64: 128, 8>}, {transform_indices = @transform_3, window_bounds = array<i64: 128, 32>}, {transform_indices = @transform_4, window_bounds = array<i64: 8, 128>}]} {
    %c0 = arith.constant 0 : index
    %c0_0 = arith.constant 0 : index
    %0 = vector.load %arg3[%c0, %c0_0] : memref<128x8xf32, #tpu.memory_space<vmem>>, vector<128x8xf32>
    %c0_1 = arith.constant 0 : index
    %c0_2 = arith.constant 0 : index
    %1 = vector.load %arg1[%c0_1, %c0_2] : memref<8x8xf32, #tpu.memory_space<vmem>>, vector<8x8xf32>
    %cst = arith.constant dense<0.000000e+00> : vector<128x8xf32>
    %2 = tpu.matmul %0, %1, %cst {dimension_numbers = #tpu.dot_dimension_numbers<[1], [0], [0], [1], [0, 0, 1, 1], [], []>} : vector<128x8xf32>, vector<8x8xf32>, vector<128x8xf32> -> vector<128x8xf32>
    %c0_3 = arith.constant 0 : index
    %c0_4 = arith.constant 0 : index
    %3 = vector.load %arg4[%c0_3, %c0_4] : memref<128x32xf32, #tpu.memory_space<vmem>>, vector<128x32xf32>
    %c0_5 = arith.constant 0 : index
    %c0_6 = arith.constant 0 : index
    %4 = vector.load %arg2[%c0_5, %c0_6] : memref<32x8xf32, #tpu.memory_space<vmem>>, vector<32x8xf32>
    %cst_7 = arith.constant dense<0.000000e+00> : vector<128x8xf32>
    %5 = tpu.matmul %3, %4, %cst_7 {dimension_numbers = #tpu.dot_dimension_numbers<[1], [0], [0], [1], [0, 0, 1, 1], [], []>} : vector<128x32xf32>, vector<32x8xf32>, vector<128x8xf32> -> vector<128x8xf32>
    %6 = arith.addf %2, %5 : vector<128x8xf32>
    %7 = tpu.transpose %6, [1, 0] : vector<128x8xf32> -> vector<8x128xf32>
    %8 = vector.extract_strided_slice %7 {offsets = [0, 0], sizes = [6, 128], strides = [1, 1]} : vector<8x128xf32> to vector<6x128xf32>
    %cst_8 = arith.constant 0.000000e+00 : f32
    %9 = vector.broadcast %cst_8 : f32 to vector<6x128xf32>
    %10 = arith.maximumf %8, %9 : vector<6x128xf32>
    %11 = math.absf %8 : vector<6x128xf32>
    %cst_9 = arith.constant 0.000000e+00 : f32
    %12 = vector.broadcast %cst_9 : f32 to vector<6x128xf32>
    %13 = arith.subf %12, %11 : vector<6x128xf32>
    %14 = math.exp %13 : vector<6x128xf32>
    %15 = math.log1p %14 : vector<6x128xf32>
    %16 = arith.addf %10, %15 : vector<6x128xf32>
    %17 = vector.extract_strided_slice %16 {offsets = [0, 0], sizes = [1, 128], strides = [1, 1]} : vector<6x128xf32> to vector<1x128xf32>
    %cst_10 = arith.constant 1.000000e+00 : f32
    %18 = vector.broadcast %cst_10 : f32 to vector<1x128xf32>
    %19 = arith.addf %18, %17 : vector<1x128xf32>
    %20 = vector.extract_strided_slice %16 {offsets = [1, 0], sizes = [1, 128], strides = [1, 1]} : vector<6x128xf32> to vector<1x128xf32>
    %cst_11 = arith.constant 9.99999997E-7 : f32
    %21 = vector.broadcast %cst_11 : f32 to vector<1x128xf32>
    %22 = arith.addf %21, %20 : vector<1x128xf32>
    %23 = vector.extract_strided_slice %16 {offsets = [2, 0], sizes = [1, 128], strides = [1, 1]} : vector<6x128xf32> to vector<1x128xf32>
    %24 = vector.extract_strided_slice %16 {offsets = [3, 0], sizes = [1, 128], strides = [1, 1]} : vector<6x128xf32> to vector<1x128xf32>
    %cst_12 = arith.constant 1.000000e+00 : f32
    %25 = vector.broadcast %cst_12 : f32 to vector<1x128xf32>
    %26 = arith.addf %25, %24 : vector<1x128xf32>
    %27 = vector.extract_strided_slice %16 {offsets = [4, 0], sizes = [1, 128], strides = [1, 1]} : vector<6x128xf32> to vector<1x128xf32>
    %cst_13 = arith.constant 9.99999997E-7 : f32
    %28 = vector.broadcast %cst_13 : f32 to vector<1x128xf32>
    %29 = arith.addf %28, %27 : vector<1x128xf32>
    %30 = vector.extract_strided_slice %16 {offsets = [5, 0], sizes = [1, 128], strides = [1, 1]} : vector<6x128xf32> to vector<1x128xf32>
    %31 = arith.addf %23, %30 : vector<1x128xf32>
    %cst_14 = arith.constant 9.99999997E-7 : f32
    %32 = vector.broadcast %cst_14 : f32 to vector<1x128xf32>
    %33 = arith.addf %31, %32 : vector<1x128xf32>
    %34 = tpu.reciprocal %33 : vector<1x128xf32> -> vector<1x128xf32>
    %35 = arith.mulf %23, %34 : vector<1x128xf32>
    %36 = arith.mulf %35, %22 : vector<1x128xf32>
    %cst_15 = arith.constant 1.000000e+00 : f32
    %37 = vector.broadcast %cst_15 : f32 to vector<1x128xf32>
    %38 = arith.subf %19, %37 : vector<1x128xf32>
    %cst_16 = arith.constant 9.99999997E-7 : f32
    %39 = vector.broadcast %cst_16 : f32 to vector<1x128xf32>
    %40 = arith.addf %38, %39 : vector<1x128xf32>
    %41 = tpu.reciprocal %40 : vector<1x128xf32> -> vector<1x128xf32>
    %42 = arith.mulf %36, %41 : vector<1x128xf32>
    %cst_17 = arith.constant 1.000000e+00 : f32
    %43 = vector.broadcast %cst_17 : f32 to vector<1x128xf32>
    %44 = arith.subf %43, %35 : vector<1x128xf32>
    %45 = arith.mulf %44, %29 : vector<1x128xf32>
    %cst_18 = arith.constant 1.000000e+00 : f32
    %46 = vector.broadcast %cst_18 : f32 to vector<1x128xf32>
    %47 = arith.subf %19, %46 : vector<1x128xf32>
    %48 = tpu.reciprocal %47 : vector<1x128xf32> -> vector<1x128xf32>
    %49 = arith.mulf %45, %48 : vector<1x128xf32>
    %50 = arith.addf %42, %49 : vector<1x128xf32>
    %cst_19 = arith.constant 0.000000e+00 : f32
    %51 = vector.broadcast %cst_19 : f32 to vector<2x128xf32>
    %52 = tpu.concatenate %50, %19, %22, %35, %26, %29, %51 in 0 : vector<1x128xf32>, vector<1x128xf32>, vector<1x128xf32>, vector<1x128xf32>, vector<1x128xf32>, vector<1x128xf32>, vector<2x128xf32> -> vector<8x128xf32>
    %c0_20 = arith.constant 0 : index
    %c0_21 = arith.constant 0 : index
    %53 = vector.load %arg5[%c0_20, %c0_21] : memref<8x128xf32, #tpu.memory_space<vmem>>, vector<8x128xf32>
    tpu.vector_store %arg5[%c0_20, %c0_21], %52 {strides = array<i32>} : memref<8x128xf32, #tpu.memory_space<vmem>>, vector<8x128xf32>,
    return
  }
  func.func @transform_0(%arg0: i32) -> (i32, i32) {
    %c0_i32 = arith.constant 0 : i32
    %c0_i32_0 = arith.constant 0 : i32
    %c0_i32_1 = arith.constant 0 : i32
    return %c0_i32, %c0_i32_0 : i32, i32
  }
  func.func @transform_1(%arg0: i32) -> (i32, i32) {
    %c0_i32 = arith.constant 0 : i32
    %c0_i32_0 = arith.constant 0 : i32
    %c0_i32_1 = arith.constant 0 : i32
    return %c0_i32, %c0_i32_0 : i32, i32
  }
  func.func @transform_2(%arg0: i32) -> (i32, i32) {
    %c0_i32 = arith.constant 0 : i32
    %c0_i32_0 = arith.constant 0 : i32
    return %arg0, %c0_i32 : i32, i32
  }
  func.func @transform_3(%arg0: i32) -> (i32, i32) {
    %c0_i32 = arith.constant 0 : i32
    %c0_i32_0 = arith.constant 0 : i32
    return %arg0, %c0_i32 : i32, i32
  }
  func.func @transform_4(%arg0: i32) -> (i32, i32) {
    %c0_i32 = arith.constant 0 : i32
    %c0_i32_0 = arith.constant 0 : i32
    return %c0_i32, %arg0 : i32, i32
  }
}

</mosaic_0001>

<llo_original>
// kernel: tm_ig_forward.1
$region0: #{tm_ig_forward.1}
  #allocation0 [shape = 'u32[]', space=smem, size = 0x4, offset = 0x4, fixed_abs, tag = 'smem constant byte address 0x4 - core index']
  #allocation1 [shape = 'u32[72,128]{1,0:T(1,128)}', space=vmem, size = 0x9000, scoped, tag = 'internal scratch']
  %s0 = inlined_call_operand.vmem [shape: f32[8,8], index: 0, kind: input, shape index: {}]
  %s1 = inlined_call_operand.vmem [shape: f32[32,8], index: 1, kind: input, shape index: {}]
  %s2 = inlined_call_operand.vmem [shape: f32[8,8], index: 2, kind: input, shape index: {}]
  %s3 = inlined_call_operand.vmem [shape: f32[8,32], index: 3, kind: input, shape index: {}]
  %s4 = inlined_call_operand.vmem [shape: f32[8,8], index: 4, kind: output, shape index: {}]
  %s5 = sld [smem:[#allocation0]]
  $region26: #{tm_ig_forward.1} parent=0
    _
  %s7 = ssub.s32 1, %s5
  %s8 = scalar_select 0, %s7, %s5
  // Predicated region
  $region2: #{tm_ig_forward.1} parent=0 // pred_check
    _
  $region3: #{tm_ig_forward.1} parent=0 // pred_check_branch
    %10 = sbr.rel (0) target = $region5
  $region4: #{tm_ig_forward.1} parent=0 // pred_region
    _
  $region5: #{tm_ig_forward.1} parent=0 // pred_fallthru
    _
  // Predicated region
  $region6: #{tm_ig_forward.1} parent=0 // pred_check
    _
  $region7: #{tm_ig_forward.1} parent=0 // pred_check_branch
    %12 = sbr.rel (0) target = $region9
  $region8: #{tm_ig_forward.1} parent=0 // pred_region
    _
  $region9: #{tm_ig_forward.1} parent=0 // pred_fallthru
    _
  // Predicated region
  $region10: #{tm_ig_forward.1} parent=0 // pred_check
    _
  $region11: #{tm_ig_forward.1} parent=0 // pred_check_branch
    %14 = sbr.rel (0) target = $region13
  $region12: #{tm_ig_forward.1} parent=0 // pred_region
    _
  $region13: #{tm_ig_forward.1} parent=0 // pred_fallthru
    _
  // Predicated region
  $region14: #{tm_ig_forward.1} parent=0 // pred_check
    _
  $region15: #{tm_ig_forward.1} parent=0 // pred_check_branch
    %16 = sbr.rel (0) target = $region17
  $region16: #{tm_ig_forward.1} parent=0 // pred_region
    _
  $region17: #{tm_ig_forward.1} parent=0 // pred_fallthru
    _
  %v17 = vld [vmem:[%s2] sm:$0xff]
  %v18 = vld [vmem:[%s2 + $0x8] sm:$0xff]
  %v19 = vld [vmem:[%s2 + $0x10] sm:$0xff]
  %v20 = vld [vmem:[%s2 + $0x18] sm:$0xff]
  %v21 = vld [vmem:[%s2 + $0x20] sm:$0xff]
  %v22 = vld [vmem:[%s2 + $0x28] sm:$0xff]
  %v23 = vld [vmem:[%s2 + $0x30] sm:$0xff]
  %v24 = vld [vmem:[%s2 + $0x38] sm:$0xff]
  %v25 = vld [vmem:[%s2 + $0x40] sm:$0xff]
  %v26 = vld [vmem:[%s2 + $0x48] sm:$0xff]
  %v27 = vld [vmem:[%s2 + $0x50] sm:$0xff]
  %v28 = vld [vmem:[%s2 + $0x58] sm:$0xff]
  %v29 = vld [vmem:[%s2 + $0x60] sm:$0xff]
  %v30 = vld [vmem:[%s2 + $0x68] sm:$0xff]
  %v31 = vld [vmem:[%s2 + $0x70] sm:$0xff]
  %v32 = vld [vmem:[%s2 + $0x78] sm:$0xff]
  %v33 = vld [vmem:[%s0] sm:$0xff]
  %v34 = vld [vmem:[%s3] sm:$0xff]
  %v35 = vld [vmem:[%s3 + $0x8] sm:$0xff]
  %v36 = vld [vmem:[%s3 + $0x10] sm:$0xff]
  %v37 = vld [vmem:[%s3 + $0x18] sm:$0xff]
  %v38 = vld [vmem:[%s3 + $0x20] sm:$0xff]
  %v39 = vld [vmem:[%s3 + $0x28] sm:$0xff]
  %v40 = vld [vmem:[%s3 + $0x30] sm:$0xff]
  %v41 = vld [vmem:[%s3 + $0x38] sm:$0xff]
  %v42 = vld [vmem:[%s3 + $0x40] sm:$0xff]
  %v43 = vld [vmem:[%s3 + $0x48] sm:$0xff]
  %v44 = vld [vmem:[%s3 + $0x50] sm:$0xff]
  %v45 = vld [vmem:[%s3 + $0x58] sm:$0xff]
  %v46 = vld [vmem:[%s3 + $0x60] sm:$0xff]
  %v47 = vld [vmem:[%s3 + $0x68] sm:$0xff]
  %v48 = vld [vmem:[%s3 + $0x70] sm:$0xff]
  %v49 = vld [vmem:[%s3 + $0x78] sm:$0xff]
  %v50 = vld [vmem:[%s1] sm:$0xff]
  %v51 = vld [vmem:[%s1 + $0x8] sm:$0xff]
  %v52 = vld [vmem:[%s1 + $0x10] sm:$0xff]
  %v53 = vld [vmem:[%s1 + $0x18] sm:$0xff]
  %vm54 = vcmask 261120
  %v56 = vsel %vm54, %v34, 0
  %v59 = vsel %vm54, %v35, 0
  %v62 = vsel %vm54, %v36, 0
  %v65 = vsel %vm54, %v37, 0
  %v68 = vsel %vm54, %v38, 0
  %v71 = vsel %vm54, %v39, 0
  %v74 = vsel %vm54, %v40, 0
  %v77 = vsel %vm54, %v41, 0
  %v80 = vsel %vm54, %v42, 0
  %v83 = vsel %vm54, %v43, 0
  %v86 = vsel %vm54, %v44, 0
  %v89 = vsel %vm54, %v45, 0
  %v92 = vsel %vm54, %v46, 0
  %v95 = vsel %vm54, %v47, 0
  %v98 = vsel %vm54, %v48, 0
  %v101 = vsel %vm54, %v49, 0
  %103 = vmatpush.msra.mxu0 0.0
  %104 = vmatpush.msra.mxu0 0.0
  %105 = vmatpush.msra.mxu0 0.0
  %106 = vmatpush.msra.mxu0 0.0
  %107 = vmatpush.msra.mxu0 0.0
  %108 = vmatpush.msra.mxu0 0.0
  %109 = vmatpush.msra.mxu0 0.0
  %110 = vmatpush.msra.mxu0 0.0
  %111 = vmatpush.msra.mxu0 0.0
  %112 = vmatpush.msra.mxu0 0.0
  %113 = vmatpush.msra.mxu0 0.0
  %114 = vmatpush.msra.mxu0 0.0
  %115 = vmatpush.msra.mxu0 %v53
  %116 = vmatpush.msra.mxu0 %v52
  %117 = vmatpush.msra.mxu0 %v51
  %118 = vmatpush.msra.mxu0 %v50
  %119 = vmatmul.f32.gmra.mxu0 %v56
  %v120 = vpop.f32.mrf.mxu0
  %v121 = vadd.f32 0.0, %v120
  %122 = vmatmul.f32.gmra.mxu0 %v59
  %v123 = vpop.f32.mrf.mxu0
  %v124 = vadd.f32 0.0, %v123
  %125 = vmatmul.f32.gmra.mxu0 %v62
  %v126 = vpop.f32.mrf.mxu0
  %v127 = vadd.f32 0.0, %v126
  %128 = vmatmul.f32.gmra.mxu0 %v65
  %v129 = vpop.f32.mrf.mxu0
  %v130 = vadd.f32 0.0, %v129
  %131 = vmatmul.f32.gmra.mxu0 %v68
  %v132 = vpop.f32.mrf.mxu0
  %v133 = vadd.f32 0.0, %v132
  %134 = vmatmul.f32.gmra.mxu0 %v71
  %v135 = vpop.f32.mrf.mxu0
  %v136 = vadd.f32 0.0, %v135
  %137 = vmatmul.f32.gmra.mxu0 %v74
  %v138 = vpop.f32.mrf.mxu0
  %v139 = vadd.f32 0.0, %v138
  %140 = vmatmul.f32.gmra.mxu0 %v77
  %v141 = vpop.f32.mrf.mxu0
  %v142 = vadd.f32 0.0, %v141
  %143 = vmatmul.f32.gmra.mxu0 %v80
  %v144 = vpop.f32.mrf.mxu0
  %v145 = vadd.f32 0.0, %v144
  %146 = vmatmul.f32.gmra.mxu0 %v83
  %v147 = vpop.f32.mrf.mxu0
  %v148 = vadd.f32 0.0, %v147
  %149 = vmatmul.f32.gmra.mxu0 %v86
  %v150 = vpop.f32.mrf.mxu0
  %v151 = vadd.f32 0.0, %v150
  %152 = vmatmul.f32.gmra.mxu0 %v89
  %v153 = vpop.f32.mrf.mxu0
  %v154 = vadd.f32 0.0, %v153
  %155 = vmatmul.f32.gmra.mxu0 %v92
  %v156 = vpop.f32.mrf.mxu0
  %v157 = vadd.f32 0.0, %v156
  %158 = vmatmul.f32.gmra.mxu0 %v95
  %v159 = vpop.f32.mrf.mxu0
  %v160 = vadd.f32 0.0, %v159
  %161 = vmatmul.f32.gmra.mxu0 %v98
  %v162 = vpop.f32.mrf.mxu0
  %v163 = vadd.f32 0.0, %v162
  %164 = vmatmul.f32.gmra.mxu0 %v101
  %v165 = vpop.f32.mrf.mxu0
  %v166 = vadd.f32 0.0, %v165
  %167 = vdwg.mxu0
  %vm168 = vcmask 64512
  %v170 = vsel %vm168, %v17, 0
  %v173 = vsel %vm168, %v18, 0
  %v176 = vsel %vm168, %v19, 0
  %v179 = vsel %vm168, %v20, 0
  %v182 = vsel %vm168, %v21, 0
  %v185 = vsel %vm168, %v22, 0
  %v188 = vsel %vm168, %v23, 0
  %v191 = vsel %vm168, %v24, 0
  %v194 = vsel %vm168, %v25, 0
  %v197 = vsel %vm168, %v26, 0
  %v200 = vsel %vm168, %v27, 0
  %v203 = vsel %vm168, %v28, 0
  %v206 = vsel %vm168, %v29, 0
  %v209 = vsel %vm168, %v30, 0
  %v212 = vsel %vm168, %v31, 0
  %v215 = vsel %vm168, %v32, 0
  %217 = vmatpush.msra.mxu0 0.0
  %218 = vmatpush.msra.mxu0 0.0
  %219 = vmatpush.msra.mxu0 0.0
  %220 = vmatpush.msra.mxu0 0.0
  %221 = vmatpush.msra.mxu0 0.0
  %222 = vmatpush.msra.mxu0 0.0
  %223 = vmatpush.msra.mxu0 0.0
  %224 = vmatpush.msra.mxu0 0.0
  %225 = vmatpush.msra.mxu0 0.0
  %226 = vmatpush.msra.mxu0 0.0
  %227 = vmatpush.msra.mxu0 0.0
  %228 = vmatpush.msra.mxu0 0.0
  %229 = vmatpush.msra.mxu0 0.0
  %230 = vmatpush.msra.mxu0 0.0
  %231 = vmatpush.msra.mxu0 0.0
  %232 = vmatpush.msra.mxu0 %v33
  %233 = vmatmul.f32.gmra.mxu0 %v170
  %v234 = vpop.f32.mrf.mxu0
  %v235 = vadd.f32 %v121, %v234
  %236 = vmatmul.f32.gmra.mxu0 %v173
  %v237 = vpop.f32.mrf.mxu0
  %v238 = vadd.f32 %v124, %v237
  %239 = vmatmul.f32.gmra.mxu0 %v176
  %v240 = vpop.f32.mrf.mxu0
  %v241 = vadd.f32 %v127, %v240
  %242 = vmatmul.f32.gmra.mxu0 %v179
  %v243 = vpop.f32.mrf.mxu0
  %v244 = vadd.f32 %v130, %v243
  %245 = vmatmul.f32.gmra.mxu0 %v182
  %v246 = vpop.f32.mrf.mxu0
  %v247 = vadd.f32 %v133, %v246
  %248 = vmatmul.f32.gmra.mxu0 %v185
  %v249 = vpop.f32.mrf.mxu0
  %v250 = vadd.f32 %v136, %v249
  %251 = vmatmul.f32.gmra.mxu0 %v188
  %v252 = vpop.f32.mrf.mxu0
  %v253 = vadd.f32 %v139, %v252
  %254 = vmatmul.f32.gmra.mxu0 %v191
  %v255 = vpop.f32.mrf.mxu0
  %v256 = vadd.f32 %v142, %v255
  %257 = vmatmul.f32.gmra.mxu0 %v194
  %v258 = vpop.f32.mrf.mxu0
  %v259 = vadd.f32 %v145, %v258
  %260 = vmatmul.f32.gmra.mxu0 %v197
  %v261 = vpop.f32.mrf.mxu0
  %v262 = vadd.f32 %v148, %v261
  %263 = vmatmul.f32.gmra.mxu0 %v200
  %v264 = vpop.f32.mrf.mxu0
  %v265 = vadd.f32 %v151, %v264
  %266 = vmatmul.f32.gmra.mxu0 %v203
  %v267 = vpop.f32.mrf.mxu0
  %v268 = vadd.f32 %v154, %v267
  %269 = vmatmul.f32.gmra.mxu0 %v206
  %v270 = vpop.f32.mrf.mxu0
  %v271 = vadd.f32 %v157, %v270
  %272 = vmatmul.f32.gmra.mxu0 %v209
  %v273 = vpop.f32.mrf.mxu0
  %v274 = vadd.f32 %v160, %v273
  %275 = vmatmul.f32.gmra.mxu0 %v212
  %v276 = vpop.f32.mrf.mxu0
  %v277 = vadd.f32 %v163, %v276
  %278 = vmatmul.f32.gmra.mxu0 %v215
  %v279 = vpop.f32.mrf.mxu0
  %v280 = vadd.f32 %v166, %v279
  %281 = vdwg.mxu0
  %282 = vxpose.xlu0.b32.start [1/16] %v235, 128
  %283 = vxpose.xlu0.b32.cont [2/16] %v238, 128
  %284 = vxpose.xlu0.b32.cont [3/16] %v241, 128
  %285 = vxpose.xlu0.b32.cont [4/16] %v244, 128
  %286 = vxpose.xlu0.b32.cont [5/16] %v247, 128
  %287 = vxpose.xlu0.b32.cont [6/16] %v250, 128
  %288 = vxpose.xlu0.b32.cont [7/16] %v253, 128
  %289 = vxpose.xlu0.b32.cont [8/16] %v256, 128
  %290 = vxpose.xlu0.b32.cont [9/16] %v259, 128
  %291 = vxpose.xlu0.b32.cont [10/16] %v262, 128
  %292 = vxpose.xlu0.b32.cont [11/16] %v265, 128
  %293 = vxpose.xlu0.b32.cont [12/16] %v268, 128
  %294 = vxpose.xlu0.b32.cont [13/16] %v271, 128
  %295 = vxpose.xlu0.b32.cont [14/16] %v274, 128
  %296 = vxpose.xlu0.b32.cont [15/16] %v277, 128
  %297 = vxpose.xlu0.b32.end [16/16] %v280, 128
  %v298 = vpop.trf.xlu0
  %v299 = vpop.trf.xlu0
  %v300 = vpop.trf.xlu0
  %v301 = vpop.trf.xlu0
  %v302 = vpop.trf.xlu0
  %v303 = vpop.trf.xlu0
  %v304 = vpop.trf.xlu0
  %v305 = vpop.trf.xlu0
  %v306 = vpop.trf.xlu0
  %v307 = vpop.trf.xlu0
  %v308 = vpop.trf.xlu0
  %v309 = vpop.trf.xlu0
  %v310 = vpop.trf.xlu0
  %v311 = vpop.trf.xlu0
  %v312 = vpop.trf.xlu0
  %v313 = vpop.trf.xlu0
  %v314 = vmax.f32 %v298, 0.0
  %v315 = vand.u32 2147483647, %v298
  %v316 = vsub.f32 0.0, %v315
  %v317 = vmul.f32 %v316, 1.442695
  %v318 = vpow.pop %v317
  %v319 = vadd.f32 %v318, 1.0
  %v320 = vlog2.pop %v319
  %v321 = vmul.f32 %v320, 0.6931472
  %v322 = vmul.f32 -0.5, %v318
  %v323 = vadd.f32 %v322, 1.0
  %v324 = vmul.f32 %v323, %v318
  %v325 = vand.u32 2147483647, %v318
  %vm326 = vcmp.lt.f32.partialorder %v325, 0.0004427343
  %v327 = vsel %vm326, %v324, %v321
  %v328 = vadd.f32 %v314, %v327
  %v329 = vadd.f32 %v328, 1.0
  %v330 = vadd.f32 %v328, 1e-06
  %v332 = vrot.slane %v328, 3
  %v334 = vadd.f32 %v328, %v332
  %v335 = vadd.f32 %v334, 1e-06
  %v336 = vrcp.pop %v335
  %v337 = vmul.f32 %v335, %v336
  %v338 = vsub.f32 1.0, %v337
  %v339 = vmul.f32 %v336, %v338
  %v340 = vadd.f32 %v336, %v339
  %vm341 = vweird.f32 %v335
  %vm342 = vweird.f32 %v336
  %vm343 = vmor %vm341, %vm342
  %v344 = vsel %vm343, %v336, %v340
  %v345 = vand.u32 2147483647, %v335
  %vm346 = vcmp.eq.f32.partialorder %v345, 8.507059e+37
  %v347 = vand.u32 %v335, 2147483648
  %v348 = vor.u32 1.1754944e-38, %v347
  %v349 = vsel %vm346, %v348, %v344
  %v350 = vmul.f32 %v328, %v349
  %v352 = vrot.slane %v330, 7
  %v354 = vmul.f32 %v350, %v352
  %v355 = vsub.f32 %v329, 1.0
  %v356 = vadd.f32 %v355, 1e-06
  %v357 = vrcp.pop %v356
  %v358 = vmul.f32 %v356, %v357
  %v359 = vsub.f32 1.0, %v358
  %v360 = vmul.f32 %v357, %v359
  %v361 = vadd.f32 %v357, %v360
  %vm362 = vweird.f32 %v356
  %vm363 = vweird.f32 %v357
  %vm364 = vmor %vm362, %vm363
  %v365 = vsel %vm364, %v357, %v361
  %v366 = vand.u32 2147483647, %v356
  %vm367 = vcmp.eq.f32.partialorder %v366, 8.507059e+37
  %v368 = vand.u32 %v356, 2147483648
  %v369 = vor.u32 1.1754944e-38, %v368
  %v370 = vsel %vm367, %v369, %v365
  %v372 = vrot.slane %v370, 6
  %v374 = vmul.f32 %v354, %v372
  %v375 = vsub.f32 1.0, %v350
  %v376 = vrot.slane %v330, 2
  %v378 = vmul.f32 %v375, %v376
  %v379 = vrcp.pop %v355
  %v380 = vmul.f32 %v355, %v379
  %v381 = vsub.f32 1.0, %v380
  %v382 = vmul.f32 %v379, %v381
  %v383 = vadd.f32 %v379, %v382
  %vm384 = vweird.f32 %v355
  %vm385 = vweird.f32 %v379
  %vm386 = vmor %vm384, %vm385
  %v387 = vsel %vm386, %v379, %v383
  %v388 = vand.u32 2147483647, %v355
  %vm389 = vcmp.eq.f32.partialorder %v388, 8.507059e+37
  %v390 = vand.u32 %v355, 2147483648
  %v391 = vor.u32 1.1754944e-38, %v390
  %v392 = vsel %vm389, %v391, %v387
  %v394 = vrot.slane %v392, 6
  %v396 = vmul.f32 %v378, %v394
  %v397 = vadd.f32 %v374, %v396
  %v399 = vrot.slane %v397, 2
  %v402 = vrot.slane %v329, 7
  %v405 = vrot.slane %v350, 7
  %vm407 = vcmask 1040384
  %v408 = vsel %vm407, %v399, %v402
  %vm409 = vcmask 1041408
  %v410 = vsel %vm409, %v408, %v352
  %vm411 = vcmask 1042432
  %v412 = vsel %vm411, %v410, %v405
  %vm413 = vcmask 1043456
  %v414 = vsel %vm413, %v412, %v402
  %vm415 = vcmask 1044480
  %v416 = vsel %vm415, %v414, %v352
  %vm417 = vcmask 1045504
  %v418 = vsel %vm417, %v416, 0.0
  %419 = vst [vmem:[%s4] sm:$0xff] %v418
  // Predicated region
  $region18: #{tm_ig_forward.1} parent=0 // pred_check
    _
  $region19: #{tm_ig_forward.1} parent=0 // pred_check_branch
    %421 = sbr.rel (0) target = $region21
  $region20: #{tm_ig_forward.1} parent=0 // pred_region
    _
  $region21: #{tm_ig_forward.1} parent=0 // pred_fallthru
    _
  // Predicated region
  $region22: #{tm_ig_forward.1} parent=0 // pred_check
    _
  $region23: #{tm_ig_forward.1} parent=0 // pred_check_branch
    %423 = sbr.rel (0) target = $region25
  $region24: #{tm_ig_forward.1} parent=0 // pred_region
    _
  $region25: #{tm_ig_forward.1} parent=0 // pred_fallthru
    _

</llo_original>
